<compile_context>
chip_gen: v5e
topology: v5e:2x2
jax: 0.10.0
libtpu: 0.0.40
codegen_flags: <defaults>
</compile_context>

<pallas_src>
import functools

import jax
import jax.numpy as jnp
from jax.experimental import pallas as pl
from jax.experimental.pallas import tpu as pltpu


def _round_up(x, m):
    return ((x + m - 1) // m) * m


def _make_mae_kernel(br, ch, sub, n_groups, needs_mask):
    """Kernel over one (br, sub, 128) block of each input; writes (1, sub, 128) f32 partials."""
    n_chunks = br // ch  # compile-time

    def kernel(yt_ref, yp_ref, out_ref):
        pid = pl.program_id(0)
        if needs_mask:
            # Number of valid rows (groups) in this block; only the last block is partial.
            valid = jnp.minimum(jnp.int32(n_groups) - pid * br, br)

        def body(c, acc):
            r0 = pl.multiple_of(c * ch, ch)
            yt = yt_ref[pl.ds(r0, ch)].astype(jnp.float32)   # (ch, sub, 128)
            yp = yp_ref[pl.ds(r0, ch)].astype(jnp.float32)
            d = jnp.abs(yt - yp)                             # VPU elementwise
            if needs_mask:
                rid = r0 + jax.lax.broadcasted_iota(jnp.int32, (ch, sub, 128), 0)
                d = jnp.where(rid < valid, d, 0.0)
            # Reduce only the leading (chunk-row) axis: pure vreg adds, no cross-lane work.
            return acc + jnp.sum(d, axis=0)                  # (sub, 128)

        acc0 = jnp.zeros((sub, 128), jnp.float32)
        acc = jax.lax.fori_loop(0, n_chunks, body, acc0, unroll=min(4, n_chunks))
        out_ref[...] = acc[None, :, :]

    return kernel


def mae_pallas(y_true, y_pred, *, target_groups=1024, min_grid=8):
    """MAE = mean(|y_true - y_pred|) via a lane-dense, streaming Pallas reduction."""
    if y_true.shape != y_pred.shape:
        # TODO(synk): keep a scalar/per-channel operand whole-resident in VMEM and
        # broadcast in-kernel instead of materializing the broadcast in HBM.
        y_true, y_pred = jnp.broadcast_arrays(y_true, y_pred)

    out_dtype = jnp.result_type(y_true.dtype, y_pred.dtype)
    if not jnp.issubdtype(out_dtype, jnp.floating):
        out_dtype = jnp.float32
    if y_true.dtype != y_pred.dtype:
        y_true = y_true.astype(out_dtype)
        y_pred = y_pred.astype(out_dtype)

    n = y_true.size
    itemsize = jnp.dtype(y_true.dtype).itemsize
    sub = {4: 8, 2: 16, 1: 32}.get(itemsize, 8)   # native sublane count for the dtype
    group = sub * 128                              # one packed vreg group (4 KiB)
    ch = max(1, 64 // sub)                         # rows/chunk -> ~8 f32 vregs per operand

    yt = y_true.reshape(-1)
    yp = y_pred.reshape(-1)

    n_groups = n // group
    bulk = n_groups * group
    tail = n - bulk

    tail_sum = None
    if tail:
        # Sub-group straggler (< sub*128 elements): trivial plain-jnp reduction.
        tail_sum = jnp.sum(jnp.abs(yt[bulk:].astype(jnp.float32)
                                   - yp[bulk:].astype(jnp.float32)))

    if n_groups == 0:
        total = tail_sum
    else:
        if tail:
            # TODO(synk): masking by flat element index in-kernel would avoid this
            # prefix slice (only hit when n is not a multiple of sub*128).
            yt_b, yp_b = yt[:bulk], yp[:bulk]
        else:
            yt_b, yp_b = yt, yp
        yt_b = yt_b.reshape(n_groups, sub, 128)
        yp_b = yp_b.reshape(n_groups, sub, 128)

        if n_groups < ch:
            ch_eff = n_groups
            br = n_groups
        else:
            ch_eff = ch
            # ~4 MiB/input/block, but keep >= min_grid blocks so the "parallel"
            # grid axis shards across both v7x TensorCores and still pipelines.
            br = min(target_groups, max(ch, _round_up(pl.cdiv(n_groups, min_grid), ch)))
        grid = pl.cdiv(n_groups, br)
        needs_mask = (n_groups % br) != 0   # only the last block can be partial

        kernel = _make_mae_kernel(br, ch_eff, sub, n_groups, needs_mask)
        partials = pl.pallas_call(
            kernel,
            out_shape=jax.ShapeDtypeStruct((grid, sub, 128), jnp.float32),
            grid=(grid,),
            in_specs=[
                pl.BlockSpec((br, sub, 128), lambda i: (i, 0, 0)),
                pl.BlockSpec((br, sub, 128), lambda i: (i, 0, 0)),
            ],
            out_specs=pl.BlockSpec((1, sub, 128), lambda i: (i, 0, 0)),
            compiler_params=pltpu.CompilerParams(
                dimension_semantics=("parallel",),
                vmem_limit_bytes=40 << 20,
            ),
        )(yt_b, yp_b)

        total = jnp.sum(partials)
        if tail_sum is not None:
            total = total + tail_sum

    mean = total / n
    return mean.astype(out_dtype)


def mae_ref(y_true, y_pred):
    """Plain-JAX reference, mirrors the PyTorch module."""
    return jnp.mean(jnp.abs(y_true - y_pred))


if __name__ == "__main__":
    key = jax.random.PRNGKey(0)
    k1, k2 = jax.random.split(key)

    # Small 5-D NCDHW volumes (same shape for both, as MAE implies).
    y_true = jax.random.uniform(k1, (2, 4, 16, 16, 16), dtype=jnp.float32)
    y_pred = jax.random.uniform(k2, (2, 4, 16, 16, 16), dtype=jnp.float32)

    mae_fn = jax.jit(mae_pallas)
    out = mae_fn(y_true, y_pred)
    jax.block_until_ready(out)

    ref = mae_ref(y_true, y_pred)
    assert jnp.allclose(out, ref, rtol=1e-5, atol=1e-5), (out, ref)

    print("KERNEL_OK")
</pallas_src>

<mosaic_0001>
module attributes {stable_mosaic.version = 11 : i64} {
  func.func @kernel(%arg0: i32, %arg1: memref<8x8x128xf32, #tpu.memory_space<vmem>>, %arg2: memref<8x8x128xf32, #tpu.memory_space<vmem>>, %arg3: memref<1x8x128xf32, #tpu.memory_space<vmem>>) attributes {dimension_semantics = [#tpu.dimension_semantics<parallel>], iteration_bounds = array<i64: 4>, scalar_prefetch = 0 : i64, scratch_operands = 0 : i64, tpu.core_type = #tpu.core_type<tc>, window_params = [{transform_indices = @transform_0, window_bounds = array<i64: 8, 8, 128>}, {transform_indices = @transform_1, window_bounds = array<i64: 8, 8, 128>}, {transform_indices = @transform_2, window_bounds = array<i64: 1, 8, 128>}]} {
    %cst = arith.constant 0.000000e+00 : f32
    %0 = vector.broadcast %cst : f32 to vector<8x128xf32>
    %c0_i32 = arith.constant 0 : i32
    %c8_i32 = arith.constant 8 : i32
    %1 = arith.muli %c0_i32, %c8_i32 : i32
    %2 = tpu.assume_multiple %1, 8 : i32
    %3 = arith.index_cast %2 : i32 to index
    %c0 = arith.constant 0 : index
    %c0_0 = arith.constant 0 : index
    %4 = vector.load %arg1[%3, %c0, %c0_0] : memref<8x8x128xf32, #tpu.memory_space<vmem>>, vector<8x8x128xf32>
    %5 = arith.index_cast %2 : i32 to index
    %c0_1 = arith.constant 0 : index
    %c0_2 = arith.constant 0 : index
    %6 = vector.load %arg2[%5, %c0_1, %c0_2] : memref<8x8x128xf32, #tpu.memory_space<vmem>>, vector<8x8x128xf32>
    %7 = arith.subf %4, %6 : vector<8x8x128xf32>
    %8 = math.absf %7 : vector<8x8x128xf32>
    %cst_3 = arith.constant dense<0.000000e+00> : vector<8x128xf32>
    %9 = vector.multi_reduction <add>, %8, %cst_3 [0] : vector<8x8x128xf32> to vector<8x128xf32>
    %10 = arith.addf %0, %9 : vector<8x128xf32>
    %c1_i32 = arith.constant 1 : i32
    %11 = vector.shape_cast %10 : vector<8x128xf32> to vector<1x8x128xf32>
    %c0_4 = arith.constant 0 : index
    %c0_5 = arith.constant 0 : index
    %c0_6 = arith.constant 0 : index
    %12 = vector.load %arg3[%c0_4, %c0_5, %c0_6] : memref<1x8x128xf32, #tpu.memory_space<vmem>>, vector<1x8x128xf32>
    tpu.vector_store %arg3[%c0_4, %c0_5, %c0_6], %11 {strides = array<i32>} : memref<1x8x128xf32, #tpu.memory_space<vmem>>, vector<1x8x128xf32>,
    return
  }
  func.func @transform_0(%arg0: i32) -> (i32, i32, i32) {
    %c0_i32 = arith.constant 0 : i32
    %c0_i32_0 = arith.constant 0 : i32
    %c0_i32_1 = arith.constant 0 : i32
    return %arg0, %c0_i32, %c0_i32_0 : i32, i32, i32
  }
  func.func @transform_1(%arg0: i32) -> (i32, i32, i32) {
    %c0_i32 = arith.constant 0 : i32
    %c0_i32_0 = arith.constant 0 : i32
    %c0_i32_1 = arith.constant 0 : i32
    return %arg0, %c0_i32, %c0_i32_0 : i32, i32, i32
  }
  func.func @transform_2(%arg0: i32) -> (i32, i32, i32) {
    %c0_i32 = arith.constant 0 : i32
    %c0_i32_0 = arith.constant 0 : i32
    %c0_i32_1 = arith.constant 0 : i32
    return %arg0, %c0_i32, %c0_i32_0 : i32, i32, i32
  }
}

</mosaic_0001>

<llo_original>
// kernel: mae_pallas.1
$region0: #{mae_pallas.1}
  #allocation0 [shape = 'u32[]', space=smem, size = 0x4, offset = 0x4, fixed_abs, tag = 'smem constant byte address 0x4 - core index']
  #allocation1 [shape = 'u32[72,128]{1,0:T(1,128)}', space=vmem, size = 0x9000, scoped, tag = 'internal scratch']
  %s0 = inlined_call_operand.vmem [shape: f32[32,8,128], index: 0, kind: input, shape index: {}]
  %s1 = inlined_call_operand.vmem [shape: f32[32,8,128], index: 1, kind: input, shape index: {}]
  %s2 = inlined_call_operand.vmem [shape: f32[4,8,128], index: 2, kind: output, shape index: {}]
  %s3 = sld [smem:[#allocation0]]
  $region41: #{mae_pallas.1} parent=0
    _
  %s5 = ssub.s32 1, %s3
  %s6 = scalar_select 0, %s5, %s3
  loop: start=0, step=1, limit=6
  $region2: #{mae_pallas.1} parent=0 // loop_pre_header
    _
  $region3: #{mae_pallas.1} parent=0 // loop_header
    %s8 = sphi 0, %s12
    %p9 = scmp.ge.s32.totalorder %s8, 6
    %s18 = sphi 0, %s20
    %s21 = sphi 0, %s18
    %s22 = sphi 0, %s21
    %s38 = sphi 0, %s22
    %s44 = sphi 0, %s46
    %s47 = sphi 0, %s44
    %s48 = sphi 0, %s47
    %s64 = sphi 0, %s48
    %s70 = sphi 0, %s72
    %s73 = sphi 0, %s70
    %s74 = sphi 0, %s73
    %s90 = sphi 0, %s74
  $region4: #{mae_pallas.1} parent=0 // loop_header_branch
    %11 = sbr.rel (%p9) target = $region8
  $region5: #{mae_pallas.1} parent=0 // loop_body
    %s13 = ssub.s32 %s8, 1
    %s14 = ssub.s32 %s8, 2
    %s15 = sadd.s32 %s8, 1
    %s16 = ssub.s32 %s8, %s15
    %p17 = scmp.eq.s32.totalorder %s16, 0
    %s19 = sadd.s32 %s18, 1
    %s20 = scalar_select %p17, %s18, %s19
    %p23 = pneg %p17
    %p24 = scmp.eq.s32.totalorder %s8, 3
    %p25 = por %p23, %p24
    %p26 = scmp.ne.s32.totalorder %s18, %s21
    %p27 = scmp.eq.s32.totalorder %s8, 0
    %p28 = por %p26, %p27
    %p29 = scmp.ne.s32.totalorder %s18, %s21
    %p30 = scmp.eq.s32.totalorder %s13, 3
    %p31 = por %p29, %p30
    %p32 = scmp.ne.s32.totalorder %s21, %s22
    %p33 = scmp.eq.s32.totalorder %s13, 0
    %p34 = por %p32, %p33
    %p35 = scmp.ne.s32.totalorder %s21, %s22
    %p36 = scmp.eq.s32.totalorder %s14, 3
    %p37 = por %p35, %p36
    %p39 = scmp.ne.s32.totalorder %s22, %s38
    %p40 = scmp.eq.s32.totalorder %s14, 0
    %p41 = por %p39, %p40
    %s42 = ssub.s32 %s8, %s15
    %p43 = scmp.eq.s32.totalorder %s42, 0
    %s45 = sadd.s32 %s44, 1
    %s46 = scalar_select %p43, %s44, %s45
    %p49 = pneg %p43
    %p50 = scmp.eq.s32.totalorder %s8, 3
    %p51 = por %p49, %p50
    %p52 = scmp.ne.s32.totalorder %s44, %s47
    %p53 = scmp.eq.s32.totalorder %s8, 0
    %p54 = por %p52, %p53
    %p55 = scmp.ne.s32.totalorder %s44, %s47
    %p56 = scmp.eq.s32.totalorder %s13, 3
    %p57 = por %p55, %p56
    %p58 = scmp.ne.s32.totalorder %s47, %s48
    %p59 = scmp.eq.s32.totalorder %s13, 0
    %p60 = por %p58, %p59
    %p61 = scmp.ne.s32.totalorder %s47, %s48
    %p62 = scmp.eq.s32.totalorder %s14, 3
    %p63 = por %p61, %p62
    %p65 = scmp.ne.s32.totalorder %s48, %s64
    %p66 = scmp.eq.s32.totalorder %s14, 0
    %p67 = por %p65, %p66
    %s68 = ssub.s32 %s8, %s15
    %p69 = scmp.eq.s32.totalorder %s68, 0
    %s71 = sadd.s32 %s70, 1
    %s72 = scalar_select %p69, %s70, %s71
    %p75 = pneg %p69
    %p76 = scmp.eq.s32.totalorder %s8, 3
    %p77 = por %p75, %p76
    %p78 = scmp.ne.s32.totalorder %s70, %s73
    %p79 = scmp.eq.s32.totalorder %s8, 0
    %p80 = por %p78, %p79
    %p81 = scmp.ne.s32.totalorder %s70, %s73
    %p82 = scmp.eq.s32.totalorder %s13, 3
    %p83 = por %p81, %p82
    %p84 = scmp.ne.s32.totalorder %s73, %s74
    %p85 = scmp.eq.s32.totalorder %s13, 0
    %p86 = por %p84, %p85
    %p87 = scmp.ne.s32.totalorder %s73, %s74
    %p88 = scmp.eq.s32.totalorder %s14, 3
    %p89 = por %p87, %p88
    %p91 = scmp.ne.s32.totalorder %s74, %s90
    %p92 = scmp.eq.s32.totalorder %s14, 0
    %p93 = por %p91, %p92
    %p94 = scmp.le.s32.totalorder 1, %s8
    %p95 = scmp.lt.s32.totalorder %s8, 5
    %p96 = pnand %p94, %p95
    %p97 = pneg %p96
    // Predicated region
    $region9: #{mae_pallas.1} parent=5 // pred_check
      _
    $region10: #{mae_pallas.1} parent=5 // pred_check_branch
      %99 = sbr.rel (%p96) target = $region12
    $region11: #{mae_pallas.1} parent=5 // pred_region
      %s100 = ssub.s32 %s8, 1
    $region12: #{mae_pallas.1} parent=5 // pred_fallthru
      _
    %p101 = scmp.lt.s32.totalorder %s8, 4
    // Predicated region
    $region13: #{mae_pallas.1} parent=5 // pred_check
      %p102 = pneg %p101
    $region14: #{mae_pallas.1} parent=5 // pred_check_branch
      %104 = sbr.rel (%p102) target = $region16
    $region15: #{mae_pallas.1} parent=5 // pred_region
      // Predicated region
      $region17: #{mae_pallas.1} parent=15 // pred_check
        %p105 = pneg %p28
      $region18: #{mae_pallas.1} parent=15 // pred_check_branch
        %107 = sbr.rel (%p105) target = $region20
      $region19: #{mae_pallas.1} parent=15 // pred_region
        %s108 = smul.u32 8, %s8
        %p109 = scmp.lt.s32.totalorder %s108, 31
        %s110 = scalar_select %p109, %s108, 31
        %s111 = smul.addr %s110, 8
        %s112 = scalar_lea.vmem %s0, %s111
        %s113 = smul.u32 8, %s8
      $region20: #{mae_pallas.1} parent=15 // pred_fallthru
        _
      // Predicated region
      $region21: #{mae_pallas.1} parent=15 // pred_check
        %p114 = pneg %p54
      $region22: #{mae_pallas.1} parent=15 // pred_check_branch
        %116 = sbr.rel (%p114) target = $region24
      $region23: #{mae_pallas.1} parent=15 // pred_region
        %s117 = smul.u32 8, %s8
        %p118 = scmp.lt.s32.totalorder %s117, 31
        %s119 = scalar_select %p118, %s117, 31
        %s120 = smul.addr %s119, 8
        %s121 = scalar_lea.vmem %s1, %s120
        %s122 = smul.u32 8, %s8
      $region24: #{mae_pallas.1} parent=15 // pred_fallthru
        _
    $region16: #{mae_pallas.1} parent=5 // pred_fallthru
      _
    %p123 = scmp.le.s32.totalorder 1, %s8
    %p124 = scmp.lt.s32.totalorder %s8, 5
    %p125 = pnand %p123, %p124
    %p126 = pneg %p125
    // Predicated region
    $region25: #{mae_pallas.1} parent=5 // pred_check
      _
    $region26: #{mae_pallas.1} parent=5 // pred_check_branch
      %128 = sbr.rel (%p125) target = $region28
    $region27: #{mae_pallas.1} parent=5 // pred_region
      %s129 = ssub.s32 %s8, 1
      %s130 = smul.u32 8, %s13
      %p131 = scmp.lt.s32.totalorder %s130, 31
      %s132 = scalar_select %p131, %s130, 31
      %s133 = smul.addr %s132, 8
      %s134 = scalar_lea.vmem %s0, %s133
      %p135 = pneg %p34
      %p136 = pneg %p31
      %s137 = smul.u32 8, %s13
      %p138 = scmp.lt.s32.totalorder %s137, 31
      %s139 = scalar_select %p138, %s137, 31
      %s140 = smul.addr %s139, 8
      %s141 = scalar_lea.vmem %s1, %s140
      %p142 = pneg %p60
      %p143 = pneg %p57
      %p144 = pneg %p86
      %p145 = pneg %p83
      %p146 = scmp.lt.s32.totalorder %s13, 3
      %s147 = scalar_select %p146, %s13, 3
      %s148 = smul.addr %s147, 8
      %s149 = scalar_lea.vmem %s2, %s148
      %s150 = smul.u32 8, %s13
      %p151 = scmp.lt.s32.totalorder %s150, 31
      %s152 = scalar_select %p151, %s150, 31
      %s153 = smul.addr %s152, 8
      %s154 = scalar_lea.vmem %s0, %s153
      %s155 = smul.u32 8, %s13
      %s156 = smul.u32 8, %s13
      %p157 = scmp.lt.s32.totalorder %s156, 31
      %s158 = scalar_select %p157, %s156, 31
      %s159 = smul.addr %s158, 8
      %s160 = scalar_lea.vmem %s1, %s159
      %s161 = smul.u32 8, %s13
      %p162 = scmp.lt.s32.totalorder %s13, 3
      %s163 = scalar_select %p162, %s13, 3
      %s164 = smul.addr %s163, 8
      %s165 = scalar_lea.vmem %s2, %s164
      %s166 = smul.u32 0, 8
      %s167 = scalar_lea.vmem %s154, %s166
      %v168 = vld [vmem:[%s167] sm:$0xff]
      %v169 = vld [vmem:[%s167 + $0x8] sm:$0xff]
      %v170 = vld [vmem:[%s167 + $0x10] sm:$0xff]
      %v171 = vld [vmem:[%s167 + $0x18] sm:$0xff]
      %v172 = vld [vmem:[%s167 + $0x20] sm:$0xff]
      %v173 = vld [vmem:[%s167 + $0x28] sm:$0xff]
      %v174 = vld [vmem:[%s167 + $0x30] sm:$0xff]
      %v175 = vld [vmem:[%s167 + $0x38] sm:$0xff]
      %s176 = scalar_lea.vmem %s160, %s166
      %v177 = vld [vmem:[%s176] sm:$0xff]
      %v178 = vld [vmem:[%s176 + $0x8] sm:$0xff]
      %v179 = vld [vmem:[%s176 + $0x10] sm:$0xff]
      %v180 = vld [vmem:[%s176 + $0x18] sm:$0xff]
      %v181 = vld [vmem:[%s176 + $0x20] sm:$0xff]
      %v182 = vld [vmem:[%s176 + $0x28] sm:$0xff]
      %v183 = vld [vmem:[%s176 + $0x30] sm:$0xff]
      %v184 = vld [vmem:[%s176 + $0x38] sm:$0xff]
      %v185 = vsub.f32 %v168, %v177
      %v186 = vsub.f32 %v169, %v178
      %v187 = vsub.f32 %v170, %v179
      %v188 = vsub.f32 %v171, %v180
      %v189 = vsub.f32 %v172, %v181
      %v190 = vsub.f32 %v173, %v182
      %v191 = vsub.f32 %v174, %v183
      %v192 = vsub.f32 %v175, %v184
      %v193 = vand.u32 2147483647, %v185
      %v194 = vand.u32 2147483647, %v186
      %v195 = vand.u32 2147483647, %v187
      %v196 = vand.u32 2147483647, %v188
      %v197 = vand.u32 2147483647, %v189
      %v198 = vand.u32 2147483647, %v190
      %v199 = vand.u32 2147483647, %v191
      %v200 = vand.u32 2147483647, %v192
      %v201 = vadd.f32 %v193, %v194
      %v202 = vadd.f32 %v201, %v195
      %v203 = vadd.f32 %v202, %v196
      %v204 = vadd.f32 %v203, %v197
      %v205 = vadd.f32 %v204, %v198
      %v206 = vadd.f32 %v205, %v199
      %v207 = vadd.f32 %v206, %v200
      %v208 = vadd.f32 %v207, 0.0
      %209 = vst [vmem:[%s165] sm:$0xff] %v208
      %p210 = scmp.lt.s32.totalorder %s13, 3
      %s211 = scalar_select %p210, %s13, 3
      %s212 = smul.addr %s211, 8
      %s213 = scalar_lea.vmem %s2, %s212
      // Predicated region
      $region29: #{mae_pallas.1} parent=27 // pred_check
        %p214 = pneg %p83
      $region30: #{mae_pallas.1} parent=27 // pred_check_branch
        %216 = sbr.rel (%p214) target = $region32
      $region31: #{mae_pallas.1} parent=27 // pred_region
        _
      $region32: #{mae_pallas.1} parent=27 // pred_fallthru
        _
    $region28: #{mae_pallas.1} parent=5 // pred_fallthru
      _
    %p217 = scmp.le.s32.totalorder 2, %s8
    // Predicated region
    $region33: #{mae_pallas.1} parent=5 // pred_check
      %p218 = pneg %p217
    $region34: #{mae_pallas.1} parent=5 // pred_check_branch
      %220 = sbr.rel (%p218) target = $region36
    $region35: #{mae_pallas.1} parent=5 // pred_region
      %s221 = ssub.s32 %s8, 2
      // Predicated region
      $region37: #{mae_pallas.1} parent=35 // pred_check
        %p222 = pneg %p89
      $region38: #{mae_pallas.1} parent=35 // pred_check_branch
        %224 = sbr.rel (%p222) target = $region40
      $region39: #{mae_pallas.1} parent=35 // pred_region
        %p225 = scmp.lt.s32.totalorder %s14, 3
        %s226 = scalar_select %p225, %s14, 3
        %s227 = smul.addr %s226, 8
        %s228 = scalar_lea.vmem %s2, %s227
      $region40: #{mae_pallas.1} parent=35 // pred_fallthru
        _
    $region36: #{mae_pallas.1} parent=5 // pred_fallthru
      _
  $region6: #{mae_pallas.1} parent=0 // loop_footer
    %s12 = sadd.s32 1, %s8
  $region7: #{mae_pallas.1} parent=0 // loop_footer_branch
    %7 = sbr.rel target = $region3
  $region8: #{mae_pallas.1} parent=0 // loop_exit
    _

</llo_original>
